<compile_context>
chip_gen: v7x
topology: tpu7x:2x2x1
jax: 0.10.0
libtpu: 0.0.40
codegen_flags: <defaults>
</compile_context>

<pallas_src>
import jax
import jax.numpy as jnp
from jax.experimental import pallas as pl
from jax.experimental.pallas import tpu as pltpu


def _cdiv(a, b):
    return -(-a // b)


def _round_up(a, b):
    return _cdiv(a, b) * b


def _vmem_config():
    """Returns (per-tile byte budget, vmem_limit_bytes) for the current chip."""
    try:
        cap = pltpu.get_tpu_info().vmem_capacity_bytes
    except Exception:
        cap = 64 << 20                      # conservative default (v7x-sized VMEM)
    if cap >= (96 << 20):                   # v5e / v6e: 128 MiB physical VMEM
        return 64 << 20, 100 << 20
    return 18 << 20, 44 << 20               # v7x: 64 MiB physical VMEM


def _choose_batch_tile(B, N, C, in_bytes, emit_gram, budget):
    """Largest per-step sample count whose buffers fit the VMEM byte budget."""
    per_sample = 2 * N * C * in_bytes       # double-buffered input tile
    per_sample += 2 * N * C * 4             # in-kernel f32 temporaries (upcast z + zn)
    per_sample += 2 * C * 4                 # double-buffered centroid rows
    if emit_gram:
        per_sample += 3 * N * N * 4         # double-buffered Gram output + f32 temp
    tb = budget // max(per_sample, 1)
    if tb >= B:
        tb = B                              # single block covers the whole batch
        if B >= 16:                         # keep >=2 steps so v7x's two TCs split it
            half = _round_up(_cdiv(B, 2), 8)
            if half < B:
                tb = half
    elif tb >= 8:
        tb = (tb // 8) * 8                  # centroid block (tb, C) needs tb % 8 == 0
    else:
        return None, None                   # even 8 samples don't fit -> caller falls back
    return tb, _cdiv(B, tb)


def _make_kernel(emit_gram):
    def kernel(z_ref, cent_ref, *maybe_gram_ref):
        z = z_ref[...].astype(jnp.float32)                    # (tb, N, C)
        sq = jnp.sum(z * z, axis=-1, keepdims=True)           # (tb, N, 1)
        # F.normalize(z, dim=-1): x / max(||x||, 1e-12) == x * rsqrt(max(||x||^2, 1e-24))
        zn = z * jax.lax.rsqrt(jnp.maximum(sq, 1e-24))
        cent_ref[...] = jnp.mean(zn, axis=1).astype(cent_ref.dtype)
        if emit_gram:
            gram_ref, = maybe_gram_ref
            gram_ref[...] = jnp.einsum(
                "bnc,bmc->bnm", zn, zn, preferred_element_type=jnp.float32)
    return kernel


def _normalize_stats(z, emit_gram):
    """Runs the Pallas kernel.

    Returns (centroids (B, C) f32, gram (B, N, N) f32 or None), where
    centroids[i] = mean_n zn[i, n] and gram[i] = zn[i] @ zn[i].T for the
    L2-normalized views zn (which never touch HBM).
    """
    B, N, C = z.shape
    in_bytes = jnp.dtype(z.dtype).itemsize
    budget, vmem_limit = _vmem_config()
    tb, grid = _choose_batch_tile(B, N, C, in_bytes, emit_gram, budget)

    if tb is None:
        # TODO(synk): huge per-sample N*C (exceeds the VMEM budget even for 8
        # samples) would need a second "arbitrary" grid axis over N with a
        # resident centroid accumulator; fall back to plain JAX for that rare shape.
        zf = z.astype(jnp.float32)
        zn = zf * jax.lax.rsqrt(
            jnp.maximum(jnp.sum(zf * zf, axis=-1, keepdims=True), 1e-24))
        cent = jnp.mean(zn, axis=1)
        gram = jnp.einsum("bnc,bmc->bnm", zn, zn) if emit_gram else None
        return cent, gram

    out_shape = [jax.ShapeDtypeStruct((B, C), jnp.float32)]
    out_specs = [pl.BlockSpec((tb, C), lambda b: (b, 0))]
    flops = 4 * B * N * C
    bytes_accessed = B * N * C * in_bytes + B * C * 4
    if emit_gram:
        out_shape.append(jax.ShapeDtypeStruct((B, N, N), jnp.float32))
        out_specs.append(pl.BlockSpec((tb, N, N), lambda b: (b, 0, 0)))
        flops += 2 * B * N * N * C
        bytes_accessed += B * N * N * 4

    res = pl.pallas_call(
        _make_kernel(emit_gram),
        out_shape=tuple(out_shape),
        grid_spec=pltpu.PrefetchScalarGridSpec(
            num_scalar_prefetch=0,
            grid=(grid,),
            in_specs=[pl.BlockSpec((tb, N, C), lambda b: (b, 0, 0))],
            out_specs=tuple(out_specs),
        ),
        compiler_params=pltpu.CompilerParams(
            dimension_semantics=("parallel",),   # batch axis splits across TCs (v7x)
            vmem_limit_bytes=vmem_limit,
        ),
        cost_estimate=pl.CostEstimate(
            flops=flops, transcendentals=B * N, bytes_accessed=bytes_accessed),
    )(z)

    cent = res[0]
    gram = res[1] if emit_gram else None
    return cent, gram


def mmcr_loss(z, lmbda=0.0, n_aug=None):
    """JAX/Pallas equivalent of MMCRLoss.forward (forward pass only).

    z: (B, N, C), (B*N, C) with n_aug given, or a list of (k_i, C) arrays.
    """
    # TODO(synk): pallas_call has no autodiff rule; wrap _normalize_stats in a
    # jax.custom_vjp if gradients of this loss are needed for training.
    if isinstance(z, (list, tuple)):
        # TODO(synk): ragged list path (variable views per sample) stays in plain
        # JAX; shapes are too data-dependent for one static Pallas grid.
        zs = [jnp.asarray(zi, dtype=jnp.float32) for zi in z]
        batch_size = len(zs)
        zn_list = [
            zi / jnp.maximum(jnp.linalg.norm(zi, axis=-1, keepdims=True), 1e-12)
            for zi in zs
        ]
        centroids = jnp.stack([jnp.mean(zi, axis=0) for zi in zn_list])
        global_nuc = jnp.sum(jnp.linalg.svd(centroids, compute_uv=False))
        if lmbda != 0.0:
            local_nuc = sum(
                jnp.sum(jnp.linalg.svd(zi, compute_uv=False)) for zi in zn_list)
            return lmbda * (local_nuc / batch_size) - global_nuc
        return -global_nuc

    z = jnp.asarray(z)                      # keep native dtype (bf16 stays bf16)
    batch_size = z.shape[0]                 # matches torch `len(z)` taken pre-reshape
    if z.ndim == 2:
        assert n_aug is not None, (
            "You must specify `n_aug` or reshape your tensor into "
            "(B, n_aug, C).")
        z = z.reshape(-1, n_aug, z.shape[-1])

    emit_gram = (lmbda != 0.0)
    centroids, gram = _normalize_stats(z, emit_gram)

    # TODO(synk): torch.linalg.svdvals has no Pallas primitive; the small
    # factorizations run in plain JAX on the kernel outputs.
    global_nuc = jnp.sum(jnp.linalg.svd(centroids, compute_uv=False))
    if not emit_gram:
        return -global_nuc

    # svdvals(zn_i) == sqrt(eigvalsh(zn_i @ zn_i^T)); singular values are
    # transpose-invariant so this matches svdvals(rearrange(zn,'B N C -> B C N')).
    eig = jnp.linalg.eigvalsh(gram)
    local_nuc = jnp.sum(jnp.sqrt(jnp.maximum(eig, 0.0)))
    return lmbda * (local_nuc / batch_size) - global_nuc


def _mmcr_loss_ref(z, lmbda=0.0):
    """Pure-JAX reference for the 3-D tensor path (sanity check)."""
    z = jnp.asarray(z, dtype=jnp.float32)
    B = z.shape[0]
    zn = z / jnp.maximum(jnp.linalg.norm(z, axis=-1, keepdims=True), 1e-12)
    centroids = jnp.mean(zn, axis=1)
    global_nuc = jnp.sum(jnp.linalg.svd(centroids, compute_uv=False))
    local_nuc = (jnp.sum(jnp.linalg.svd(zn, compute_uv=False))
                 if lmbda != 0.0 else 0.0)
    return lmbda * (local_nuc / B) - global_nuc


if __name__ == "__main__":
    key = jax.random.PRNGKey(0)
    k1, k2 = jax.random.split(key)

    # Small primary shape: batch=2, n_aug=8 views, hidden=32.
    B, N, C = 2, 8, 32
    z = jax.random.normal(k1, (B, N, C), dtype=jnp.float32)

    loss0 = jax.block_until_ready(mmcr_loss(z, lmbda=0.0))    # centroid-only kernel
    loss1 = jax.block_until_ready(mmcr_loss(z, lmbda=0.5))    # centroid + Gram kernel
    ref0 = _mmcr_loss_ref(z, lmbda=0.0)
    ref1 = _mmcr_loss_ref(z, lmbda=0.5)
    assert jnp.allclose(loss0, ref0, atol=1e-4, rtol=1e-4), (loss0, ref0)
    assert jnp.allclose(loss1, ref1, atol=1e-3, rtol=1e-3), (loss1, ref1)

    # 2-D input path ((B*N, C) with n_aug); lmbda=0 so the batch_size
    # convention does not change the value.
    loss2 = jax.block_until_ready(
        mmcr_loss(z.reshape(B * N, C), lmbda=0.0, n_aug=N))
    assert jnp.allclose(loss2, ref0, atol=1e-4, rtol=1e-4), (loss2, ref0)

    # Larger shape exercising a multi-step grid with a masked partial trailing
    # block (B=20 is not a multiple of the chosen tile) and both loss terms.
    B2, N2, C2 = 20, 4, 128
    z2 = jax.random.normal(k2, (B2, N2, C2), dtype=jnp.float32)
    loss3 = jax.block_until_ready(mmcr_loss(z2, lmbda=0.25))
    ref3 = _mmcr_loss_ref(z2, lmbda=0.25)
    assert jnp.allclose(loss3, ref3, atol=1e-3, rtol=1e-3), (loss3, ref3)

    print("KERNEL_OK")
</pallas_src>

<mosaic_0001>
module attributes {stable_mosaic.version = 11 : i64} {
  func.func @kernel(%arg0: i32, %arg1: memref<2x8x32xf32, #tpu.memory_space<vmem>>, %arg2: memref<2x32xf32, #tpu.memory_space<vmem>>) attributes {dimension_semantics = [#tpu.dimension_semantics<parallel>], iteration_bounds = array<i64: 1>, scalar_prefetch = 0 : i64, scratch_operands = 0 : i64, tpu.core_type = #tpu.core_type<tc>, window_params = [{transform_indices = @transform_0, window_bounds = array<i64: 2, 8, 32>}, {transform_indices = @transform_1, window_bounds = array<i64: 2, 32>}]} {
    %c0 = arith.constant 0 : index
    %c0_0 = arith.constant 0 : index
    %c0_1 = arith.constant 0 : index
    %0 = vector.load %arg1[%c0, %c0_0, %c0_1] : memref<2x8x32xf32, #tpu.memory_space<vmem>>, vector<2x8x32xf32>
    %1 = arith.mulf %0, %0 : vector<2x8x32xf32>
    %cst = arith.constant dense<0.000000e+00> : vector<2x8xf32>
    %2 = vector.multi_reduction <add>, %1, %cst [2] : vector<2x8x32xf32> to vector<2x8xf32>
    %3 = vector.shape_cast %2 : vector<2x8xf32> to vector<2x8x1xf32>
    %cst_2 = arith.constant 1.000000e-24 : f32
    %4 = vector.broadcast %cst_2 : f32 to vector<2x8x1xf32>
    %5 = arith.maximumf %3, %4 : vector<2x8x1xf32>
    %6 = math.rsqrt %5 : vector<2x8x1xf32>
    %7 = vector.broadcast %6 : vector<2x8x1xf32> to vector<2x8x32xf32>
    %8 = arith.mulf %0, %7 : vector<2x8x32xf32>
    %cst_3 = arith.constant dense<0.000000e+00> : vector<2x32xf32>
    %9 = vector.multi_reduction <add>, %8, %cst_3 [1] : vector<2x8x32xf32> to vector<2x32xf32>
    %cst_4 = arith.constant 8.000000e+00 : f32
    %10 = vector.broadcast %cst_4 : f32 to vector<2x32xf32>
    %11 = arith.divf %9, %10 : vector<2x32xf32>
    %c0_5 = arith.constant 0 : index
    %c0_6 = arith.constant 0 : index
    %12 = vector.load %arg2[%c0_5, %c0_6] : memref<2x32xf32, #tpu.memory_space<vmem>>, vector<2x32xf32>
    tpu.vector_store %arg2[%c0_5, %c0_6], %11 {strides = array<i32>} : memref<2x32xf32, #tpu.memory_space<vmem>>, vector<2x32xf32>,
    return
  }
  func.func @transform_0(%arg0: i32) -> (i32, i32, i32) {
    %c0_i32 = arith.constant 0 : i32
    %c0_i32_0 = arith.constant 0 : i32
    %c0_i32_1 = arith.constant 0 : i32
    return %arg0, %c0_i32, %c0_i32_0 : i32, i32, i32
  }
  func.func @transform_1(%arg0: i32) -> (i32, i32) {
    %c0_i32 = arith.constant 0 : i32
    %c0_i32_0 = arith.constant 0 : i32
    return %arg0, %c0_i32 : i32, i32
  }
}

</mosaic_0001>

<llo_original>
// kernel: tpu_custom_call.1
$region0: #{tpu_custom_call.1}
  #allocation0 [shape = 'u32[]', space=smem, size = 0x4, offset = 0x4, fixed_abs, tag = 'smem constant byte address 0x4 - core index']
  #allocation1 [shape = 'u32[144,128]{1,0:T(1,128)}', space=vmem, size = 0x12000, scoped, tag = 'internal scratch']
  %s0 = inlined_call_operand.hbm [shape: f32[2,8,32], index: 0, kind: input, shape index: {}]
  %s1 = inlined_call_operand.hbm [shape: f32[2,32], index: 1, kind: output, shape index: {}]
  %s2 = sld [smem:[#allocation0]]
  $region18: #{tpu_custom_call.1} parent=0
    _
  %s4 = ssub.s32 1, %s2
  %s5 = scalar_select 0, %s4, %s2
  $region1: #{tpu_custom_call.1} parent=0
    #allocation2 [shape = 'u8[8192]{0}', space=vmem, size = 0x2000, scoped, tag = 'input window, operand 0, single buffered']
    #allocation3 [shape = 's32[1]{0}', space=sflag, size = 0x4, scoped, tag = 'scoped memory for tpu_custom_call.1']
    #allocation4 [shape = 's32[1]{0}', space=sflag, size = 0x4, scoped, tag = 'scoped memory for tpu_custom_call.1']
    #allocation5 [shape = 'u8[1024]{0}', space=vmem, size = 0x400, scoped, tag = 'output window, operand 0, single buffered']
    %6 = vsyncpa [#allocation3], 0
    %7 = vsyncpa [#allocation4], 0
    // Predicated region
    $region2: #{tpu_custom_call.1} parent=1 // pred_check
      _
    $region3: #{tpu_custom_call.1} parent=1 // pred_check_branch
      %9 = sbr.rel (0) target = $region5
    $region4: #{tpu_custom_call.1} parent=1 // pred_region
      %s11 = ssub.s32 256, 256
      %12 = vsyncadd [#allocation3], %s11
      %s13 = sshll.u32 [#allocation2], 4
      %s14 = int_to_ptr.vmem [resolvable:$true] %s13
      %19 = dma.hbm_to_vmem [thread:$0]  %s0, 256, %s14, [#allocation3], 128, 128, 8
    $region5: #{tpu_custom_call.1} parent=1 // pred_fallthru
      _
    // Predicated region
    $region6: #{tpu_custom_call.1} parent=1 // pred_check
      _
    $region7: #{tpu_custom_call.1} parent=1 // pred_check_branch
      %21 = sbr.rel (0) target = $region9
    $region8: #{tpu_custom_call.1} parent=1 // pred_region
      %22 = dma.done [#allocation3], 256
    $region9: #{tpu_custom_call.1} parent=1 // pred_fallthru
      _
    %v23 = vld [vmem:[#allocation2] sm:$0xff]
    %v24 = vld [vmem:[#allocation2 + $0x8] sm:$0xff]
    %v25 = vmul.f32 %v23, %v23
    %v26 = vmul.f32 %v24, %v24
    %vm27 = vcmask 261120
    %v28 = vsel %vm27, %v25, 0.0
    %29 = vadd.xlane.f32.xlu0 %v28
    %v30 = vpop.xlane.xlu0 %29
    %v31 = vsel %vm27, %v26, 0.0
    %32 = vadd.xlane.f32.xlu0 %v31
    %v33 = vpop.xlane.xlu0 %32
    %v34 = vmax.f32 %v30, 1e-24
    %v35 = vmax.f32 %v33, 1e-24
    %v36 = vrsqrt.pop %v34
    %v37 = vrsqrt.pop %v35
    %v38 = vmul.f32 %v23, %v36
    %v39 = vmul.f32 %v24, %v37
    %v40 = vsel %vm27, %v38, 0.0
    %v41 = vrot.slane %v40, 4
    %v42 = vadd.f32 %v40, %v41
    %v43 = vrot.slane %v42, 2
    %v44 = vadd.f32 %v42, %v43
    %v45 = vrot.slane %v44, 1
    %v46 = vadd.f32 %v44, %v45
    %v47 = vsel %vm27, %v39, 0.0
    %v48 = vrot.slane %v47, 4
    %v49 = vadd.f32 %v47, %v48
    %v50 = vrot.slane %v49, 2
    %v51 = vadd.f32 %v49, %v50
    %v52 = vrot.slane %v51, 1
    %v53 = vadd.f32 %v51, %v52
    %v54 = vrcp.pop 8.0
    %v55 = vmul.f32 %v46, %v54
    %v56 = vmul.f32 %v53, %v54
    %vm59 = vcmask 1041409
    %v60 = vsel %vm59, %v56, %v55
    %vm62 = vcmask 254976
    %63 = vst.msk [vmem:[#allocation5] sm:$0x3] %vm62, %v60
    // Predicated region
    $region10: #{tpu_custom_call.1} parent=1 // pred_check
      _
    $region11: #{tpu_custom_call.1} parent=1 // pred_check_branch
      %65 = sbr.rel (0) target = $region13
    $region12: #{tpu_custom_call.1} parent=1 // pred_region
      %s67 = ssub.s32 32, 32
      %68 = vsyncadd [#allocation4], %s67
      %s70 = sshll.u32 [#allocation5], 4
      %s71 = int_to_ptr.vmem [resolvable:$true] %s70
      %73 = dma.vmem_to_hbm [thread:$0]  %s71, 32, %s1, [#allocation4]
    $region13: #{tpu_custom_call.1} parent=1 // pred_fallthru
      _
    // Predicated region
    $region14: #{tpu_custom_call.1} parent=1 // pred_check
      _
    $region15: #{tpu_custom_call.1} parent=1 // pred_check_branch
      %75 = sbr.rel (0) target = $region17
    $region16: #{tpu_custom_call.1} parent=1 // pred_region
      %76 = dma.done [#allocation4], 32
    $region17: #{tpu_custom_call.1} parent=1 // pred_fallthru
      _
    %77 = vsyncpa [#allocation3], 1
    %78 = vsyncpa [#allocation4], 1

</llo_original>
